<compile_context>
chip_gen: v5e
topology: v5e:2x2
jax: 0.10.0
libtpu: 0.0.40
codegen_flags: <defaults>
</compile_context>

<pallas_src>
import jax
import jax.numpy as jnp
from jax.experimental import pallas as pl
from jax.experimental.pallas import tpu as pltpu


# ----------------------------------------------------------------------------
# Fit + operator folding (pure JAX, runs once per model fit)
# ----------------------------------------------------------------------------
def fit_bspm(train, ideal_cutoff):
    """BSPM.fit: normalized item-item filter, ideal-filter basis, item degrees
    from a (num_users, num_items) binary interaction matrix."""
    train = train.astype(jnp.float32)
    user_deg = jnp.maximum(train.sum(axis=1), 1.0)   # (U,)
    item_deg = jnp.maximum(train.sum(axis=0), 1.0)   # (N,)
    r_norm = train / jnp.sqrt(user_deg)[:, None] / jnp.sqrt(item_deg)[None, :]
    P = r_norm.T @ r_norm                            # (N, N) linear filter
    _, _, vt = jnp.linalg.svd(r_norm, full_matrices=False)
    Vk = vt[:ideal_cutoff]                           # (K, N) ideal-filter basis
    return P.astype(jnp.float32), Vk.astype(jnp.float32), item_deg.astype(jnp.float32)


def build_bspm_operator(P, Vk, item_deg, *, sharp_solv="euler", sharp_step=2,
                        sharp_time=1.0, ideal_cutoff=8, ideal_weight=0.3,
                        early_merge=False, sharp_off=False, point_combi=False,
                        filter_dtype=jnp.bfloat16):
    """Fold the entire BSPM forward into one (N, N) operator W_eff so that
    forward(x) == x @ W_eff. All algebra in f32; cast only at the end."""
    P = P.astype(jnp.float32)
    N = P.shape[0]
    use_ideal = (ideal_cutoff > 0) and (ideal_weight > 0)

    if use_ideal:
        dinv = item_deg ** -0.5
        dpos = item_deg ** 0.5
        A = Vk * dinv[None, :]                         # (K, N)  pre-norm basis
        Bm = (ideal_weight * Vk) * dpos[None, :]       # (K, N)  post-norm basis

    if sharp_off:
        W = P
        if use_ideal:
            W = W + A.T @ Bm
        return W.astype(filter_dtype)

    dt = sharp_time / sharp_step
    I = jnp.eye(N, dtype=jnp.float32)
    if sharp_solv == "euler":
        Q = I - dt * P                                 # one euler step: y <- y @ Q
    elif sharp_solv == "rk4":
        dtP = dt * P                                   # y <- y @ (I - dtP + dtP^2/2 - dtP^3/6 + dtP^4/24)
        P2 = dtP @ dtP
        P3 = P2 @ dtP
        P4 = P3 @ dtP
        Q = I - dtP + P2 / 2.0 - P3 / 6.0 + P4 / 24.0
    else:
        # TODO(synk): adaptive-step solvers (dopri5, ...) not supported.
        raise NotImplementedError(sharp_solv)

    # Qs = Q^sharp_step ; S = Q + Q^2 + ... + Q^sharp_step
    Qs = I
    S = jnp.zeros_like(P)
    for _ in range(sharp_step):                        # static, small trip count
        Qs = Qs @ Q
        S = S + Qs

    if point_combi:
        # out = mean([linear_out, y_1..y_s]) [+ ideal if not early_merge]
        # (trajectory[0] is replaced by linear_out, matching the reference)
        scale = jnp.float32(1.0 / (sharp_step + 1))
        W = scale * (P + P @ S)
        if use_ideal:
            if early_merge:
                W = W + A.T @ (scale * (Bm @ S))
            else:
                W = W + A.T @ Bm
    else:
        # out = y0 @ Q^s [+ ideal if not early_merge],  y0 = linear [+ ideal]
        W = P @ Qs
        if use_ideal:
            if early_merge:
                W = W + A.T @ (Bm @ Qs)
            else:
                W = W + A.T @ Bm
    return W.astype(filter_dtype)


# ----------------------------------------------------------------------------
# Pallas kernel: tiled GEMM  out = x @ W_eff
# ----------------------------------------------------------------------------
def _bspm_gemm_kernel(x_ref, w_ref, o_ref, acc_ref):
    @pl.when(pl.program_id(2) == 0)
    def _():
        acc_ref[...] = jnp.zeros_like(acc_ref)

    acc_ref[...] += jnp.dot(x_ref[...], w_ref[...],
                            preferred_element_type=jnp.float32)

    @pl.when(pl.program_id(2) == pl.num_programs(2) - 1)
    def _():
        o_ref[...] = acc_ref[...].astype(o_ref.dtype)


def _pick_tile(dim, target, align):
    """Largest multiple of `align` <= target that divides `dim`; falls back to
    the full extent (a block equal to the array dim is always legal)."""
    if dim <= target:
        return dim
    cand = (target // align) * align
    while cand >= align:
        if dim % cand == 0:
            return cand
        cand -= align
    return dim


def bspm_forward(inter, w_eff, *, tb=None, tn=None, tk=None):
    """BSPM.forward(inter) = inter @ W_eff as a tiled Pallas GEMM (f32 out)."""
    B, N = inter.shape
    assert w_eff.shape == (N, N)
    x = inter.astype(w_eff.dtype)          # binary interactions: exact in bf16

    # Batch tile -> MXU rows (batch more users per call to fill 128/256 rows).
    TB = tb or _pick_tile(B, 256, 8)
    TN = tn or _pick_tile(N, 512, 128)     # lane-dense output tile
    TK = tk or _pick_tile(N, 512, 128)     # contraction tile

    grid = (B // TB, N // TN, N // TK)

    itemsize = jnp.dtype(w_eff.dtype).itemsize
    # double-buffered x/W/out tiles + f32 accumulator scratch, with headroom
    vmem_bytes = (2 * TB * TK * itemsize + 2 * TK * TN * itemsize
                  + 2 * TB * TN * 4 + TB * TN * 4)
    vmem_limit = int(min(max(2 * vmem_bytes + (4 << 20), 32 << 20), 64 << 20))

    return pl.pallas_call(
        _bspm_gemm_kernel,
        out_shape=jax.ShapeDtypeStruct((B, N), jnp.float32),
        grid_spec=pltpu.PrefetchScalarGridSpec(
            num_scalar_prefetch=0,
            grid=grid,
            in_specs=[pl.BlockSpec((TB, TK), lambda i, j, k: (i, k)),
                      pl.BlockSpec((TK, TN), lambda i, j, k: (k, j))],
            out_specs=pl.BlockSpec((TB, TN), lambda i, j, k: (i, j)),
            scratch_shapes=[pltpu.VMEM((TB, TN), jnp.float32)]),
        compiler_params=pltpu.CompilerParams(
            dimension_semantics=("parallel", "parallel", "arbitrary"),
            vmem_limit_bytes=vmem_limit),
    )(x, w_eff)


# ----------------------------------------------------------------------------
# Pure-JAX unfolded reference mirroring the PyTorch forward (for verification)
# ----------------------------------------------------------------------------
def bspm_forward_ref(inter, P, Vk, item_deg, *, sharp_solv, sharp_step,
                     sharp_time, ideal_cutoff, ideal_weight, early_merge,
                     sharp_off, point_combi):
    x = inter.astype(jnp.float32)
    linear_out = x @ P
    use_ideal = (ideal_cutoff > 0) and (ideal_weight > 0)
    ideal_out = None
    if use_ideal:
        dinv = item_deg ** -0.5
        dpos = item_deg ** 0.5
        ideal_out = ideal_weight * (((x * dinv[None, :]) @ Vk.T) @ Vk) * dpos[None, :]
    out = linear_out
    if early_merge and use_ideal:
        out = out + ideal_out
    if not sharp_off:
        dt = sharp_time / sharp_step
        f = lambda y: -(y @ P)
        if sharp_solv == "euler":
            step = lambda y: y + dt * f(y)
        else:  # rk4
            def step(y):
                k1 = f(y); k2 = f(y + 0.5 * dt * k1)
                k3 = f(y + 0.5 * dt * k2); k4 = f(y + dt * k3)
                return y + (dt / 6.0) * (k1 + 2 * k2 + 2 * k3 + k4)
        traj = [out]
        for _ in range(sharp_step):
            traj.append(step(traj[-1]))
        if point_combi:
            out = jnp.stack([linear_out] + traj[1:]).mean(axis=0)
        else:
            out = traj[-1]
    if (not early_merge) and use_ideal:
        out = out + ideal_out
    return out


if __name__ == "__main__":
    key = jax.random.PRNGKey(0)
    k_train, k_batch = jax.random.split(key)

    num_users, num_items, batch = 64, 256, 8
    cfg = dict(sharp_solv="euler", sharp_step=2, sharp_time=1.0,
               ideal_cutoff=8, ideal_weight=0.3,
               early_merge=False, sharp_off=False, point_combi=False)

    # Deterministic synthetic "training" interactions -> fit the filters.
    train = (jax.random.uniform(k_train, (num_users, num_items)) < 0.1
             ).astype(jnp.float32)
    P, Vk, item_deg = fit_bspm(train, cfg["ideal_cutoff"])

    # Deterministic observed interactions for the batch being scored.
    inter = (jax.random.uniform(k_batch, (batch, num_items)) < 0.1
             ).astype(jnp.float32)

    ref = bspm_forward_ref(inter, P, Vk, item_deg, **cfg)

    # 1) f32 folded operator: verifies the fold is exact (tight tolerance).
    W32 = build_bspm_operator(P, Vk, item_deg, filter_dtype=jnp.float32, **cfg)
    out32 = jax.block_until_ready(bspm_forward(inter, W32))
    assert out32.shape == (batch, num_items) and out32.dtype == jnp.float32
    assert jnp.allclose(out32, ref, rtol=2e-3, atol=2e-3)

    # 2) bf16 folded operator: fast path (half VMEM/DMA bytes, 2x MXU rate),
    #    f32 accumulation inside the kernel; relaxed tolerance for the cast.
    Wbf = build_bspm_operator(P, Vk, item_deg, filter_dtype=jnp.bfloat16, **cfg)
    outbf = jax.block_until_ready(bspm_forward(inter, Wbf))
    assert jnp.allclose(outbf, ref, rtol=2e-2, atol=2e-2)

    # 3) Exercise the other fold branches (rk4 + early_merge + point_combi).
    cfg2 = dict(sharp_solv="rk4", sharp_step=2, sharp_time=1.0,
                ideal_cutoff=8, ideal_weight=0.3,
                early_merge=True, sharp_off=False, point_combi=True)
    ref2 = bspm_forward_ref(inter, P, Vk, item_deg, **cfg2)
    W2 = build_bspm_operator(P, Vk, item_deg, filter_dtype=jnp.float32, **cfg2)
    out2 = jax.block_until_ready(bspm_forward(inter, W2))
    assert jnp.allclose(out2, ref2, rtol=2e-3, atol=2e-3)

    print("KERNEL_OK")
</pallas_src>

<mosaic_0001>
module attributes {stable_mosaic.version = 11 : i64} {
  func.func @_bspm_gemm_kernel(%arg0: i32, %arg1: i32, %arg2: i32, %arg3: memref<8x256xf32, #tpu.memory_space<vmem>>, %arg4: memref<256x256xf32, #tpu.memory_space<vmem>>, %arg5: memref<8x256xf32, #tpu.memory_space<vmem>>, %arg6: memref<8x256xf32, #tpu.memory_space<vmem>>) attributes {dimension_semantics = [#tpu.dimension_semantics<parallel>, #tpu.dimension_semantics<parallel>, #tpu.dimension_semantics<arbitrary>], iteration_bounds = array<i64: 1, 1, 1>, scalar_prefetch = 0 : i64, scratch_operands = 1 : i64, tpu.core_type = #tpu.core_type<tc>, window_params = [{transform_indices = @transform_0, window_bounds = array<i64: 8, 256>}, {transform_indices = @transform_1, window_bounds = array<i64: 256, 256>}, {transform_indices = @transform_2, window_bounds = array<i64: 8, 256>}]} {
    %c0_i32 = arith.constant 0 : i32
    %0 = arith.cmpi eq, %arg2, %c0_i32 : i32
    %1 = arith.extui %0 : i1 to i32
    %c0_i32_0 = arith.constant 0 : i32
    %2 = arith.cmpi ne, %1, %c0_i32_0 : i32
    scf.if %2 {
      %cst_10 = arith.constant 0.000000e+00 : f32
      %12 = vector.broadcast %cst_10 : f32 to vector<8x256xf32>
      %c0_11 = arith.constant 0 : index
      %c0_12 = arith.constant 0 : index
      %13 = vector.load %arg6[%c0_11, %c0_12] : memref<8x256xf32, #tpu.memory_space<vmem>>, vector<8x256xf32>
      tpu.vector_store %arg6[%c0_11, %c0_12], %12 {strides = array<i32>} : memref<8x256xf32, #tpu.memory_space<vmem>>, vector<8x256xf32>,
    } else {
    }
    %c0 = arith.constant 0 : index
    %c0_1 = arith.constant 0 : index
    %3 = vector.load %arg6[%c0, %c0_1] : memref<8x256xf32, #tpu.memory_space<vmem>>, vector<8x256xf32>
    %c0_2 = arith.constant 0 : index
    %c0_3 = arith.constant 0 : index
    %4 = vector.load %arg3[%c0_2, %c0_3] : memref<8x256xf32, #tpu.memory_space<vmem>>, vector<8x256xf32>
    %c0_4 = arith.constant 0 : index
    %c0_5 = arith.constant 0 : index
    %5 = vector.load %arg4[%c0_4, %c0_5] : memref<256x256xf32, #tpu.memory_space<vmem>>, vector<256x256xf32>
    %cst = arith.constant dense<0.000000e+00> : vector<8x256xf32>
    %6 = tpu.matmul %4, %5, %cst {dimension_numbers = #tpu.dot_dimension_numbers<[1], [0], [0], [1], [0, 0, 1, 1], [], []>} : vector<8x256xf32>, vector<256x256xf32>, vector<8x256xf32> -> vector<8x256xf32>
    %7 = arith.addf %3, %6 : vector<8x256xf32>
    %c0_6 = arith.constant 0 : index
    %c0_7 = arith.constant 0 : index
    %8 = vector.load %arg6[%c0_6, %c0_7] : memref<8x256xf32, #tpu.memory_space<vmem>>, vector<8x256xf32>
    tpu.vector_store %arg6[%c0_6, %c0_7], %7 {strides = array<i32>} : memref<8x256xf32, #tpu.memory_space<vmem>>, vector<8x256xf32>,
    %c0_i32_8 = arith.constant 0 : i32
    %9 = arith.cmpi eq, %arg2, %c0_i32_8 : i32
    %10 = arith.extui %9 : i1 to i32
    %c0_i32_9 = arith.constant 0 : i32
    %11 = arith.cmpi ne, %10, %c0_i32_9 : i32
    scf.if %11 {
      %c0_10 = arith.constant 0 : index
      %c0_11 = arith.constant 0 : index
      %12 = vector.load %arg6[%c0_10, %c0_11] : memref<8x256xf32, #tpu.memory_space<vmem>>, vector<8x256xf32>
      %c0_12 = arith.constant 0 : index
      %c0_13 = arith.constant 0 : index
      %13 = vector.load %arg5[%c0_12, %c0_13] : memref<8x256xf32, #tpu.memory_space<vmem>>, vector<8x256xf32>
      tpu.vector_store %arg5[%c0_12, %c0_13], %12 {strides = array<i32>} : memref<8x256xf32, #tpu.memory_space<vmem>>, vector<8x256xf32>,
    } else {
    }
    return
  }
  func.func @transform_0(%arg0: i32, %arg1: i32, %arg2: i32) -> (i32, i32) {
    %c0_i32 = arith.constant 0 : i32
    return %arg0, %arg2 : i32, i32
  }
  func.func @transform_1(%arg0: i32, %arg1: i32, %arg2: i32) -> (i32, i32) {
    %c0_i32 = arith.constant 0 : i32
    return %arg2, %arg1 : i32, i32
  }
  func.func @transform_2(%arg0: i32, %arg1: i32, %arg2: i32) -> (i32, i32) {
    %c0_i32 = arith.constant 0 : i32
    return %arg0, %arg1 : i32, i32
  }
}

</mosaic_0001>

<llo_original>
// kernel: tpu_custom_call.1
$region0: #{tpu_custom_call.1}
  #allocation0 [shape = 'u32[]', space=smem, size = 0x4, offset = 0x4, fixed_abs, tag = 'smem constant byte address 0x4 - core index']
  #allocation1 [shape = 'u32[72,128]{1,0:T(1,128)}', space=vmem, size = 0x9000, scoped, tag = 'internal scratch']
  #allocation2 [shape = 'f32[8,256]{1,0:T(8,128)}', space=vmem, size = 0x2000, scoped, tag = 'scratch operand']
  %s0 = inlined_call_operand.hbm [shape: f32[8,256], index: 0, kind: input, shape index: {}]
  %s1 = inlined_call_operand.hbm [shape: f32[256,256], index: 1, kind: input, shape index: {}]
  %s2 = inlined_call_operand.hbm [shape: f32[8,256], index: 2, kind: output, shape index: {}]
  %s3 = sld [smem:[#allocation0]]
  $region34: #{tpu_custom_call.1} parent=0
    _
  %s5 = ssub.s32 1, %s3
  %s6 = scalar_select 0, %s5, %s3
  $region1: #{tpu_custom_call.1} parent=0
    #allocation3 [shape = 'u8[8192]{0}', space=vmem, size = 0x2000, scoped, tag = 'input window, operand 0, single buffered']
    #allocation4 [shape = 's32[1]{0}', space=sflag, size = 0x4, scoped, tag = 'scoped memory for tpu_custom_call.1']
    #allocation5 [shape = 's32[1]{0}', space=sflag, size = 0x4, scoped, tag = 'scoped memory for tpu_custom_call.1']
    #allocation6 [shape = 'u8[262144]{0}', space=vmem, size = 0x40000, scoped, tag = 'input window, operand 1, single buffered']
    #allocation7 [shape = 's32[1]{0}', space=sflag, size = 0x4, scoped, tag = 'scoped memory for tpu_custom_call.1']
    #allocation8 [shape = 'u8[8192]{0}', space=vmem, size = 0x2000, scoped, tag = 'output window, operand 0, single buffered']
    %7 = vsyncpa [#allocation4], 0
    %8 = vsyncpa [#allocation7], 0
    %9 = vsyncpa [#allocation5], 0
    // Predicated region
    $region2: #{tpu_custom_call.1} parent=1 // pred_check
      _
    $region3: #{tpu_custom_call.1} parent=1 // pred_check_branch
      %11 = sbr.rel (0) target = $region5
    $region4: #{tpu_custom_call.1} parent=1 // pred_region
      %13 = vsyncadd [#allocation4], 0
      %s15 = sshll.u32 %s0, 4
      %s16 = int_to_ptr.hbm [resolvable:$true] %s15
      %s17 = sshll.u32 [#allocation3], 4
      %s18 = int_to_ptr.vmem [resolvable:$true] %s17
      %20 = dma.hbm_to_vmem [thread:$0]  %s16, 256, %s18, [#allocation4]
    $region5: #{tpu_custom_call.1} parent=1 // pred_fallthru
      _
    // Predicated region
    $region6: #{tpu_custom_call.1} parent=1 // pred_check
      _
    $region7: #{tpu_custom_call.1} parent=1 // pred_check_branch
      %22 = sbr.rel (0) target = $region9
    $region8: #{tpu_custom_call.1} parent=1 // pred_region
      %24 = vsyncadd [#allocation7], 0
      %s25 = sshll.u32 %s1, 4
      %s26 = int_to_ptr.hbm [resolvable:$true] %s25
      %s27 = sshll.u32 [#allocation6], 4
      %s28 = int_to_ptr.vmem [resolvable:$true] %s27
      %33 = dma.hbm_to_vmem [thread:$0]  %s26, 8192, %s28, [#allocation7], 256, 256, 16
    $region9: #{tpu_custom_call.1} parent=1 // pred_fallthru
      _
    // Predicated region
    $region10: #{tpu_custom_call.1} parent=1 // pred_check
      _
    $region11: #{tpu_custom_call.1} parent=1 // pred_check_branch
      %35 = sbr.rel (0) target = $region13
    $region12: #{tpu_custom_call.1} parent=1 // pred_region
      %37 = dma.done [#allocation4], 256
    $region13: #{tpu_custom_call.1} parent=1 // pred_fallthru
      _
    // Predicated region
    $region14: #{tpu_custom_call.1} parent=1 // pred_check
      _
    $region15: #{tpu_custom_call.1} parent=1 // pred_check_branch
      %39 = sbr.rel (0) target = $region17
    $region16: #{tpu_custom_call.1} parent=1 // pred_region
      %41 = dma.done [#allocation7], 8192
    $region17: #{tpu_custom_call.1} parent=1 // pred_fallthru
      _
    %p42 = scmp.eq.s32.totalorder 0, 0
    // Predicated region
    $region18: #{tpu_custom_call.1} parent=1 // pred_check
      %p43 = pneg %p42
    $region19: #{tpu_custom_call.1} parent=1 // pred_check_branch
      %45 = sbr.rel (%p43) target = $region21
    $region20: #{tpu_custom_call.1} parent=1 // pred_region
      %46 = vst [vmem:[#allocation2] sm:$0xff] 0.0
      %47 = vst [vmem:[#allocation2 + $0x8] sm:$0xff] 0.0
    $region21: #{tpu_custom_call.1} parent=1 // pred_fallthru
      _
    %v48 = vld [vmem:[#allocation2] sm:$0xff]
    %v49 = vld [vmem:[#allocation2 + $0x8] sm:$0xff]
    %v50 = vld [vmem:[#allocation3] sm:$0xff]
    %v51 = vld [vmem:[#allocation3 + $0x8] sm:$0xff]
    %v52 = vld [vmem:[#allocation6] sm:$0xff]
    %v53 = vld [vmem:[#allocation6 + $0x8] sm:$0xff]
    %v54 = vld [vmem:[#allocation6 + $0x10] sm:$0xff]
    %v55 = vld [vmem:[#allocation6 + $0x18] sm:$0xff]
    %v56 = vld [vmem:[#allocation6 + $0x20] sm:$0xff]
    %v57 = vld [vmem:[#allocation6 + $0x28] sm:$0xff]
    %v58 = vld [vmem:[#allocation6 + $0x30] sm:$0xff]
    %v59 = vld [vmem:[#allocation6 + $0x38] sm:$0xff]
    %v60 = vld [vmem:[#allocation6 + $0x40] sm:$0xff]
    %v61 = vld [vmem:[#allocation6 + $0x48] sm:$0xff]
    %v62 = vld [vmem:[#allocation6 + $0x50] sm:$0xff]
    %v63 = vld [vmem:[#allocation6 + $0x58] sm:$0xff]
    %v64 = vld [vmem:[#allocation6 + $0x60] sm:$0xff]
    %v65 = vld [vmem:[#allocation6 + $0x68] sm:$0xff]
    %v66 = vld [vmem:[#allocation6 + $0x70] sm:$0xff]
    %v67 = vld [vmem:[#allocation6 + $0x78] sm:$0xff]
    %v68 = vld [vmem:[#allocation6 + $0x80] sm:$0xff]
    %v69 = vld [vmem:[#allocation6 + $0x88] sm:$0xff]
    %v70 = vld [vmem:[#allocation6 + $0x90] sm:$0xff]
    %v71 = vld [vmem:[#allocation6 + $0x98] sm:$0xff]
    %v72 = vld [vmem:[#allocation6 + $0xa0] sm:$0xff]
    %v73 = vld [vmem:[#allocation6 + $0xa8] sm:$0xff]
    %v74 = vld [vmem:[#allocation6 + $0xb0] sm:$0xff]
    %v75 = vld [vmem:[#allocation6 + $0xb8] sm:$0xff]
    %v76 = vld [vmem:[#allocation6 + $0xc0] sm:$0xff]
    %v77 = vld [vmem:[#allocation6 + $0xc8] sm:$0xff]
    %v78 = vld [vmem:[#allocation6 + $0xd0] sm:$0xff]
    %v79 = vld [vmem:[#allocation6 + $0xd8] sm:$0xff]
    %v80 = vld [vmem:[#allocation6 + $0xe0] sm:$0xff]
    %v81 = vld [vmem:[#allocation6 + $0xe8] sm:$0xff]
    %v82 = vld [vmem:[#allocation6 + $0xf0] sm:$0xff]
    %v83 = vld [vmem:[#allocation6 + $0xf8] sm:$0xff]
    %v84 = vld [vmem:[#allocation6 + $0x100] sm:$0xff]
    %v85 = vld [vmem:[#allocation6 + $0x108] sm:$0xff]
    %v86 = vld [vmem:[#allocation6 + $0x110] sm:$0xff]
    %v87 = vld [vmem:[#allocation6 + $0x118] sm:$0xff]
    %v88 = vld [vmem:[#allocation6 + $0x120] sm:$0xff]
    %v89 = vld [vmem:[#allocation6 + $0x128] sm:$0xff]
    %v90 = vld [vmem:[#allocation6 + $0x130] sm:$0xff]
    %v91 = vld [vmem:[#allocation6 + $0x138] sm:$0xff]
    %v92 = vld [vmem:[#allocation6 + $0x140] sm:$0xff]
    %v93 = vld [vmem:[#allocation6 + $0x148] sm:$0xff]
    %v94 = vld [vmem:[#allocation6 + $0x150] sm:$0xff]
    %v95 = vld [vmem:[#allocation6 + $0x158] sm:$0xff]
    %v96 = vld [vmem:[#allocation6 + $0x160] sm:$0xff]
    %v97 = vld [vmem:[#allocation6 + $0x168] sm:$0xff]
    %v98 = vld [vmem:[#allocation6 + $0x170] sm:$0xff]
    %v99 = vld [vmem:[#allocation6 + $0x178] sm:$0xff]
    %v100 = vld [vmem:[#allocation6 + $0x180] sm:$0xff]
    %v101 = vld [vmem:[#allocation6 + $0x188] sm:$0xff]
    %v102 = vld [vmem:[#allocation6 + $0x190] sm:$0xff]
    %v103 = vld [vmem:[#allocation6 + $0x198] sm:$0xff]
    %v104 = vld [vmem:[#allocation6 + $0x1a0] sm:$0xff]
    %v105 = vld [vmem:[#allocation6 + $0x1a8] sm:$0xff]
    %v106 = vld [vmem:[#allocation6 + $0x1b0] sm:$0xff]
    %v107 = vld [vmem:[#allocation6 + $0x1b8] sm:$0xff]
    %v108 = vld [vmem:[#allocation6 + $0x1c0] sm:$0xff]
    %v109 = vld [vmem:[#allocation6 + $0x1c8] sm:$0xff]
    %v110 = vld [vmem:[#allocation6 + $0x1d0] sm:$0xff]
    %v111 = vld [vmem:[#allocation6 + $0x1d8] sm:$0xff]
    %v112 = vld [vmem:[#allocation6 + $0x1e0] sm:$0xff]
    %v113 = vld [vmem:[#allocation6 + $0x1e8] sm:$0xff]
    %v114 = vld [vmem:[#allocation6 + $0x1f0] sm:$0xff]
    %v115 = vld [vmem:[#allocation6 + $0x1f8] sm:$0xff]
    %116 = vmatpush.msra.mxu0 %v82
    %117 = vmatpush.msra.mxu0 %v80
    %118 = vmatpush.msra.mxu0 %v78
    %119 = vmatpush.msra.mxu0 %v76
    %120 = vmatpush.msra.mxu0 %v74
    %121 = vmatpush.msra.mxu0 %v72
    %122 = vmatpush.msra.mxu0 %v70
    %123 = vmatpush.msra.mxu0 %v68
    %124 = vmatpush.msra.mxu0 %v66
    %125 = vmatpush.msra.mxu0 %v64
    %126 = vmatpush.msra.mxu0 %v62
    %127 = vmatpush.msra.mxu0 %v60
    %128 = vmatpush.msra.mxu0 %v58
    %129 = vmatpush.msra.mxu0 %v56
    %130 = vmatpush.msra.mxu0 %v54
    %131 = vmatpush.msra.mxu0 %v52
    %132 = vmatmul.f32.gmra.mxu0 %v50
    %v133 = vpop.f32.mrf.mxu0
    %v134 = vadd.f32 0.0, %v133
    %135 = vdwg.mxu0
    %136 = vmatpush.msra.mxu0 %v114
    %137 = vmatpush.msra.mxu0 %v112
    %138 = vmatpush.msra.mxu0 %v110
    %139 = vmatpush.msra.mxu0 %v108
    %140 = vmatpush.msra.mxu0 %v106
    %141 = vmatpush.msra.mxu0 %v104
    %142 = vmatpush.msra.mxu0 %v102
    %143 = vmatpush.msra.mxu0 %v100
    %144 = vmatpush.msra.mxu0 %v98
    %145 = vmatpush.msra.mxu0 %v96
    %146 = vmatpush.msra.mxu0 %v94
    %147 = vmatpush.msra.mxu0 %v92
    %148 = vmatpush.msra.mxu0 %v90
    %149 = vmatpush.msra.mxu0 %v88
    %150 = vmatpush.msra.mxu0 %v86
    %151 = vmatpush.msra.mxu0 %v84
    %152 = vmatmul.f32.gmra.mxu0 %v51
    %v153 = vpop.f32.mrf.mxu0
    %v154 = vadd.f32 %v134, %v153
    %155 = vdwg.mxu0
    %156 = vmatpush.msra.mxu0 %v83
    %157 = vmatpush.msra.mxu0 %v81
    %158 = vmatpush.msra.mxu0 %v79
    %159 = vmatpush.msra.mxu0 %v77
    %160 = vmatpush.msra.mxu0 %v75
    %161 = vmatpush.msra.mxu0 %v73
    %162 = vmatpush.msra.mxu0 %v71
    %163 = vmatpush.msra.mxu0 %v69
    %164 = vmatpush.msra.mxu0 %v67
    %165 = vmatpush.msra.mxu0 %v65
    %166 = vmatpush.msra.mxu0 %v63
    %167 = vmatpush.msra.mxu0 %v61
    %168 = vmatpush.msra.mxu0 %v59
    %169 = vmatpush.msra.mxu0 %v57
    %170 = vmatpush.msra.mxu0 %v55
    %171 = vmatpush.msra.mxu0 %v53
    %172 = vmatmul.f32.gmra.mxu0 %v50
    %v173 = vpop.f32.mrf.mxu0
    %v174 = vadd.f32 0.0, %v173
    %175 = vdwg.mxu0
    %176 = vmatpush.msra.mxu0 %v115
    %177 = vmatpush.msra.mxu0 %v113
    %178 = vmatpush.msra.mxu0 %v111
    %179 = vmatpush.msra.mxu0 %v109
    %180 = vmatpush.msra.mxu0 %v107
    %181 = vmatpush.msra.mxu0 %v105
    %182 = vmatpush.msra.mxu0 %v103
    %183 = vmatpush.msra.mxu0 %v101
    %184 = vmatpush.msra.mxu0 %v99
    %185 = vmatpush.msra.mxu0 %v97
    %186 = vmatpush.msra.mxu0 %v95
    %187 = vmatpush.msra.mxu0 %v93
    %188 = vmatpush.msra.mxu0 %v91
    %189 = vmatpush.msra.mxu0 %v89
    %190 = vmatpush.msra.mxu0 %v87
    %191 = vmatpush.msra.mxu0 %v85
    %192 = vmatmul.f32.gmra.mxu0 %v51
    %v193 = vpop.f32.mrf.mxu0
    %v194 = vadd.f32 %v174, %v193
    %195 = vdwg.mxu0
    %v196 = vadd.f32 %v48, %v154
    %v197 = vadd.f32 %v49, %v194
    %198 = vst [vmem:[#allocation2] sm:$0xff] %v196
    %199 = vst [vmem:[#allocation2 + $0x8] sm:$0xff] %v197
    // Predicated region
    $region22: #{tpu_custom_call.1} parent=1 // pred_check
      %p200 = pneg %p42
    $region23: #{tpu_custom_call.1} parent=1 // pred_check_branch
      %202 = sbr.rel (%p200) target = $region25
    $region24: #{tpu_custom_call.1} parent=1 // pred_region
      %v203 = vld [vmem:[#allocation2] sm:$0xff]
      %v204 = vld [vmem:[#allocation2 + $0x8] sm:$0xff]
      %205 = vst [vmem:[#allocation8] sm:$0xff] %v203
      %206 = vst [vmem:[#allocation8 + $0x8] sm:$0xff] %v204
    $region25: #{tpu_custom_call.1} parent=1 // pred_fallthru
      _
    // Predicated region
    $region26: #{tpu_custom_call.1} parent=1 // pred_check
      _
    $region27: #{tpu_custom_call.1} parent=1 // pred_check_branch
      %208 = sbr.rel (0) target = $region29
    $region28: #{tpu_custom_call.1} parent=1 // pred_region
      %210 = vsyncadd [#allocation5], 0
      %s212 = sshll.u32 [#allocation8], 4
      %s213 = int_to_ptr.vmem [resolvable:$true] %s212
      %s214 = sshll.u32 %s2, 4
      %s215 = int_to_ptr.hbm [resolvable:$true] %s214
      %217 = dma.vmem_to_hbm [thread:$0]  %s213, 256, %s215, [#allocation5]
    $region29: #{tpu_custom_call.1} parent=1 // pred_fallthru
      _
    // Predicated region
    $region30: #{tpu_custom_call.1} parent=1 // pred_check
      _
    $region31: #{tpu_custom_call.1} parent=1 // pred_check_branch
      %219 = sbr.rel (0) target = $region33
    $region32: #{tpu_custom_call.1} parent=1 // pred_region
      %221 = dma.done [#allocation5], 256
    $region33: #{tpu_custom_call.1} parent=1 // pred_fallthru
      _
    %222 = vsyncpa [#allocation4], 1
    %223 = vsyncpa [#allocation7], 1
    %224 = vsyncpa [#allocation5], 1

</llo_original>
